<compile_context>
chip_gen: v5e
topology: v5e:2x2
jax: 0.10.0
libtpu: 0.0.40
codegen_flags: <defaults>
</compile_context>

<pallas_src>
import functools

import jax
import jax.numpy as jnp
from jax.experimental import pallas as pl
from jax.experimental.pallas import tpu as pltpu


_MIB = 1024 * 1024


def _vmem_budgets():
    """Generation-aware (vmem_limit_bytes, fused_slab_cap, hw_tile_target)."""
    try:
        cap = int(pltpu.get_tpu_info().vmem_capacity_bytes)
    except Exception:
        cap = 64 * _MIB                       # conservative v7x-class fallback
    # Leave headroom for compiler scratch: 3/4 of physical, capped at 96 MiB.
    vmem_limit = min((cap * 3) // 4, 96 * _MIB)   # v5e/v6e -> 96 MiB, v7x -> 48 MiB
    fused_cap = vmem_limit // 6                   # double-buffered in+out + headroom
    hw_target = max(2 * _MIB, vmem_limit // 12)   # v5e/v6e -> 8 MiB, v7x -> 4 MiB
    return vmem_limit, fused_cap, hw_target


# ---------------------------------------------------------------------------
# Fused path: one (TB, C, HW) slab per grid step, gridded over batch tiles.
# ---------------------------------------------------------------------------
def _se_fused_kernel(x_ref, w1_ref, w2_ref, o_ref, *, inv_hw):
    # x_ref : (TB, C, HW) input activations (input dtype)
    # w1_ref: (C, Cr)     first FC weight  (y @ w1), resident
    # w2_ref: (Cr, C)     second FC weight (h @ w2), resident
    # o_ref : (TB, C, HW) output
    # Squeeze: global average pool; f32 accumulation without materializing an
    # f32 copy of the whole slab.
    y = jnp.sum(x_ref[...], axis=-1, dtype=jnp.float32) * inv_hw       # (TB, C)

    # Excite: FC -> ReLU -> FC -> sigmoid (bias-free), once per batch tile.
    h = jnp.maximum(
        jnp.dot(y, w1_ref[...].astype(jnp.float32),
                preferred_element_type=jnp.float32), 0.0)               # (TB, Cr)
    g = jax.nn.sigmoid(
        jnp.dot(h, w2_ref[...].astype(jnp.float32),
                preferred_element_type=jnp.float32))                    # (TB, C)

    # Scale: re-read x from VMEM (keeps peak footprint ~1x slab) and multiply
    # in the input dtype (no f32 copy of the big tensor).
    o_ref[...] = x_ref[...] * g.astype(o_ref.dtype)[:, :, None]


# ---------------------------------------------------------------------------
# Two-pass streaming path (per-batch slab exceeds the fused VMEM budget).
# ---------------------------------------------------------------------------
def _se_pool_kernel(x_ref, s_ref, *, hw_total, hw_tile):
    # Pass 1: pooled SUM only (mean/FC/sigmoid hoisted out of this loop).
    # x_ref : (1, C, hw_tile) ; s_ref : (1, 1, C) f32 resident accumulator
    # (lane-dense output: C on lanes).
    k = pl.program_id(1)

    @pl.when(k == 0)
    def _init():
        s_ref[...] = jnp.zeros_like(s_ref)

    x = x_ref[...]
    if hw_total % hw_tile != 0:
        # Mask padded lanes of the (cdiv) edge block out of the sum.
        lane = jax.lax.broadcasted_iota(jnp.int32, x.shape, 2)
        x = jnp.where(k * hw_tile + lane < hw_total, x, jnp.zeros_like(x))
    s_ref[...] += jnp.sum(x, axis=-1, dtype=jnp.float32)[:, None, :]    # (1,1,C)


def _se_gate_kernel(p_ref, w1_ref, w2_ref, g_ref, *, inv_hw):
    # One-shot gate for ALL batches: (B,C)@(C,Cr) -> ReLU -> (B,Cr)@(Cr,C)
    # -> sigmoid.  Output shaped (B, C, 1) so pass 2 broadcasts along lanes.
    y = p_ref[...][:, 0, :] * inv_hw                                    # (B, C)
    h = jnp.maximum(
        jnp.dot(y, w1_ref[...].astype(jnp.float32),
                preferred_element_type=jnp.float32), 0.0)               # (B, Cr)
    g = jax.nn.sigmoid(
        jnp.dot(h, w2_ref[...].astype(jnp.float32),
                preferred_element_type=jnp.float32))                    # (B, C)
    g_ref[...] = g[:, :, None]                                          # (B, C, 1)


def _se_scale_kernel(g_ref, x_ref, o_ref):
    # Pass 2: o = x * gate.  Gate resident per batch; x streamed.
    # g_ref : (1, C, 1) f32 ; x_ref/o_ref : (1, C, hw_tile)
    o_ref[...] = x_ref[...] * g_ref[...].astype(o_ref.dtype)


# ---------------------------------------------------------------------------
# Tile pickers
# ---------------------------------------------------------------------------
def _pick_batch_tile(b, slab_bytes, cap_bytes, target_bytes=4 * _MIB):
    """Largest divisor of B so TB*slab is ~target (and within the fused cap)."""
    budget = min(cap_bytes, max(target_bytes, slab_bytes))
    tb_max = max(1, min(b, budget // max(1, slab_bytes)))
    for tb in range(int(tb_max), 0, -1):
        if b % tb == 0:
            return tb
    return 1


def _pick_hw_tile(hw, c, itemsize, target_bytes):
    """Largest lane-aligned spatial tile within ~target_bytes per x block."""
    if hw <= 128:
        return hw
    max_lanes = max(128, target_bytes // max(1, c * itemsize))
    max_lanes = min(max_lanes, hw)
    max_lanes = (max_lanes // 128) * 128
    # Prefer a 128-multiple that evenly divides HW (no masked edge block).
    for t in range(max_lanes, 127, -128):
        if hw % t == 0:
            return t
    return max_lanes


def _x_stream_spec(c, hw_tile):
    """x BlockSpec for the scale pass; deeper pipelining when available."""
    idx = lambda b, k: (b, 0, k)
    if hasattr(pl, "Buffered"):
        try:
            return pl.BlockSpec((1, c, hw_tile), idx, pipeline_mode=pl.Buffered(3))
        except TypeError:
            pass
    return pl.BlockSpec((1, c, hw_tile), idx)


# ---------------------------------------------------------------------------
# Wrapper
# ---------------------------------------------------------------------------
def se_layer(x_nchw, w1, w2, *, force_two_pass=False, hw_tile=None):
    """Squeeze-and-Excitation forward.

    x_nchw: (B, C, H, W)
    w1    : (C, C // reduction)   -- first Linear weight, transposed (y @ w1)
    w2    : (C // reduction, C)   -- second Linear weight, transposed (h @ w2)
    returns (B, C, H, W)
    """
    B, C, H, W = x_nchw.shape
    HW = H * W
    Cr = w1.shape[1]
    assert w1.shape == (C, Cr) and w2.shape == (Cr, C)

    x = x_nchw.reshape(B, C, HW)
    itemsize = x.dtype.itemsize
    inv_hw = 1.0 / float(HW)

    vmem_limit, fused_cap, hw_target = _vmem_budgets()
    slab_bytes = C * HW * itemsize
    w_bytes = w1.size * w1.dtype.itemsize + w2.size * w2.dtype.itemsize

    # ---- Fused path: pool + gate + scale in one pass over x ---------------
    if slab_bytes <= fused_cap and not force_two_pass:
        TB = _pick_batch_tile(B, slab_bytes, fused_cap)
        out = pl.pallas_call(
            functools.partial(_se_fused_kernel, inv_hw=inv_hw),
            out_shape=jax.ShapeDtypeStruct((B, C, HW), x.dtype),
            grid=(B // TB,),
            in_specs=[
                pl.BlockSpec((TB, C, HW), lambda b: (b, 0, 0)),
                pl.BlockSpec((C, Cr), lambda b: (0, 0)),       # resident weights
                pl.BlockSpec((Cr, C), lambda b: (0, 0)),
            ],
            out_specs=pl.BlockSpec((TB, C, HW), lambda b: (b, 0, 0)),
            compiler_params=pltpu.CompilerParams(
                dimension_semantics=("parallel",),
                vmem_limit_bytes=vmem_limit),
            cost_estimate=pl.CostEstimate(
                flops=2 * B * C * HW + 4 * B * C * Cr,
                transcendentals=B * C,
                bytes_accessed=2 * B * C * HW * itemsize + w_bytes),
        )(x, w1, w2)
        return out.reshape(B, C, H, W)

    # ---- Two-pass streaming path ------------------------------------------
    if hw_tile is None:
        hw_tile = _pick_hw_tile(HW, C, itemsize, target_bytes=hw_target)
    hw_tile = int(min(hw_tile, HW))
    n_hw = pl.cdiv(HW, hw_tile)

    # Pass 1: pooled sum per (batch, channel); reduction axis last.
    pooled = pl.pallas_call(
        functools.partial(_se_pool_kernel, hw_total=HW, hw_tile=hw_tile),
        out_shape=jax.ShapeDtypeStruct((B, 1, C), jnp.float32),
        grid=(B, n_hw),
        in_specs=[pl.BlockSpec((1, C, hw_tile), lambda b, k: (b, 0, k))],
        out_specs=pl.BlockSpec((1, 1, C), lambda b, k: (b, 0, 0)),
        compiler_params=pltpu.CompilerParams(
            dimension_semantics=("parallel", "arbitrary"),
            vmem_limit_bytes=vmem_limit),
        cost_estimate=pl.CostEstimate(
            flops=B * C * HW, transcendentals=0,
            bytes_accessed=B * C * HW * itemsize + B * C * 4),
    )(x)

    # Gate: tiny one-shot kernel for all batches (hoisted out of the stream).
    gate = pl.pallas_call(
        functools.partial(_se_gate_kernel, inv_hw=inv_hw),
        out_shape=jax.ShapeDtypeStruct((B, C, 1), jnp.float32),
        cost_estimate=pl.CostEstimate(
            flops=4 * B * C * Cr, transcendentals=B * C,
            bytes_accessed=2 * B * C * 4 + w_bytes),
    )(pooled, w1, w2)

    # Pass 2: stream x again and scale by the resident per-batch gate.
    out = pl.pallas_call(
        _se_scale_kernel,
        out_shape=jax.ShapeDtypeStruct((B, C, HW), x.dtype),
        grid=(B, n_hw),
        in_specs=[
            pl.BlockSpec((1, C, 1), lambda b, k: (b, 0, 0)),   # resident gate
            _x_stream_spec(C, hw_tile),
        ],
        out_specs=pl.BlockSpec((1, C, hw_tile), lambda b, k: (b, 0, k)),
        compiler_params=pltpu.CompilerParams(
            dimension_semantics=("parallel", "parallel"),
            vmem_limit_bytes=vmem_limit),
        cost_estimate=pl.CostEstimate(
            flops=B * C * HW, transcendentals=0,
            bytes_accessed=2 * B * C * HW * itemsize + B * C * 4),
    )(gate, x)
    return out.reshape(B, C, H, W)


def se_layer_ref(x_nchw, w1, w2):
    """Pure-JAX reference matching the PyTorch forward exactly."""
    y = jnp.mean(x_nchw.astype(jnp.float32), axis=(2, 3))          # (B, C)
    h = jnp.maximum(y @ w1.astype(jnp.float32), 0.0)               # (B, Cr)
    s = jax.nn.sigmoid(h @ w2.astype(jnp.float32))                 # (B, C)
    return (x_nchw.astype(jnp.float32) * s[:, :, None, None]).astype(x_nchw.dtype)


if __name__ == "__main__":
    # Small shapes consistent with SELayer(channel=64, reduction=16).
    B, C, H, W = 2, 64, 16, 16
    reduction = 16
    Cr = C // reduction

    key = jax.random.PRNGKey(0)
    kx, k1, k2, kx2 = jax.random.split(key, 4)

    x = jax.random.normal(kx, (B, C, H, W), dtype=jnp.float32)
    # nn.Linear(bias=False)-style synthetic weights, scale ~ 1/sqrt(fan_in).
    w1 = jax.random.normal(k1, (C, Cr), dtype=jnp.float32) * (1.0 / jnp.sqrt(C))
    w2 = jax.random.normal(k2, (Cr, C), dtype=jnp.float32) * (1.0 / jnp.sqrt(Cr))

    ref = se_layer_ref(x, w1, w2)

    # 1) Fused, batch-tiled path (both images pack into one block here).
    out = jax.block_until_ready(se_layer(x, w1, w2))
    assert out.shape == (B, C, H, W)
    assert jnp.allclose(out, ref, atol=2e-5, rtol=2e-5), "fused path mismatch"

    # 2) Two-pass streaming path with an evenly-dividing spatial tile.
    out2 = jax.block_until_ready(
        se_layer(x, w1, w2, force_two_pass=True, hw_tile=128))
    assert jnp.allclose(out2, ref, atol=2e-5, rtol=2e-5), "two-pass path mismatch"

    # 3) Two-pass path with a ragged spatial extent (HW=225 -> masked edge block).
    H2 = W2 = 15
    x3 = jax.random.normal(kx2, (B, C, H2, W2), dtype=jnp.float32)
    ref3 = se_layer_ref(x3, w1, w2)
    out3 = jax.block_until_ready(se_layer(x3, w1, w2, force_two_pass=True))
    assert jnp.allclose(out3, ref3, atol=2e-5, rtol=2e-5), "masked two-pass mismatch"

    # 4) bf16 fused path (scale multiply done in bf16 -> ~1 ulp vs f32 ref).
    xb = x.astype(jnp.bfloat16)
    refb = se_layer_ref(xb, w1, w2).astype(jnp.float32)
    outb = jax.block_until_ready(se_layer(xb, w1, w2)).astype(jnp.float32)
    assert jnp.allclose(outb, refb, atol=5e-2, rtol=5e-2), "bf16 fused mismatch"

    print("KERNEL_OK")
</pallas_src>

<mosaic_0001>
module attributes {stable_mosaic.version = 11 : i64} {
  func.func @_se_fused_kernel(%arg0: i32, %arg1: memref<2x64x256xf32, #tpu.memory_space<vmem>>, %arg2: memref<64x4xf32, #tpu.memory_space<vmem>>, %arg3: memref<4x64xf32, #tpu.memory_space<vmem>>, %arg4: memref<2x64x256xf32, #tpu.memory_space<vmem>>) attributes {dimension_semantics = [#tpu.dimension_semantics<parallel>], iteration_bounds = array<i64: 1>, scalar_prefetch = 0 : i64, scratch_operands = 0 : i64, tpu.core_type = #tpu.core_type<tc>, window_params = [{transform_indices = @transform_0, window_bounds = array<i64: 2, 64, 256>}, {pipeline_mode = #tpu.pipeline_mode<synchronous>, transform_indices = @transform_1, window_bounds = array<i64: 64, 4>}, {pipeline_mode = #tpu.pipeline_mode<synchronous>, transform_indices = @transform_2, window_bounds = array<i64: 4, 64>}, {transform_indices = @transform_3, window_bounds = array<i64: 2, 64, 256>}]} {
    %c0 = arith.constant 0 : index
    %c0_0 = arith.constant 0 : index
    %c0_1 = arith.constant 0 : index
    %0 = vector.load %arg1[%c0, %c0_0, %c0_1] : memref<2x64x256xf32, #tpu.memory_space<vmem>>, vector<2x64x256xf32>
    %cst = arith.constant dense<0.000000e+00> : vector<2x64xf32>
    %1 = vector.multi_reduction <add>, %0, %cst [2] : vector<2x64x256xf32> to vector<2x64xf32>
    %cst_2 = arith.constant 3.906250e-03 : f32
    %2 = vector.broadcast %cst_2 : f32 to vector<2x64xf32>
    %3 = arith.mulf %1, %2 : vector<2x64xf32>
    %c0_3 = arith.constant 0 : index
    %c0_4 = arith.constant 0 : index
    %4 = vector.load %arg2[%c0_3, %c0_4] : memref<64x4xf32, #tpu.memory_space<vmem>>, vector<64x4xf32>
    %cst_5 = arith.constant dense<0.000000e+00> : vector<2x4xf32>
    %5 = tpu.matmul %3, %4, %cst_5 {dimension_numbers = #tpu.dot_dimension_numbers<[1], [0], [0], [1], [0, 0, 1, 1], [], []>} : vector<2x64xf32>, vector<64x4xf32>, vector<2x4xf32> -> vector<2x4xf32>
    %cst_6 = arith.constant 0.000000e+00 : f32
    %6 = vector.broadcast %cst_6 : f32 to vector<2x4xf32>
    %7 = arith.maximumf %5, %6 : vector<2x4xf32>
    %c0_7 = arith.constant 0 : index
    %c0_8 = arith.constant 0 : index
    %8 = vector.load %arg3[%c0_7, %c0_8] : memref<4x64xf32, #tpu.memory_space<vmem>>, vector<4x64xf32>
    %cst_9 = arith.constant dense<0.000000e+00> : vector<2x64xf32>
    %9 = tpu.matmul %7, %8, %cst_9 {dimension_numbers = #tpu.dot_dimension_numbers<[1], [0], [0], [1], [0, 0, 1, 1], [], []>} : vector<2x4xf32>, vector<4x64xf32>, vector<2x64xf32> -> vector<2x64xf32>
    %10 = arith.negf %9 : vector<2x64xf32>
    %11 = math.exp %10 : vector<2x64xf32>
    %cst_10 = arith.constant 1.000000e+00 : f32
    %12 = vector.broadcast %cst_10 : f32 to vector<2x64xf32>
    %13 = arith.addf %12, %11 : vector<2x64xf32>
    %14 = arith.divf %12, %13 : vector<2x64xf32>
    %c0_11 = arith.constant 0 : index
    %c0_12 = arith.constant 0 : index
    %c0_13 = arith.constant 0 : index
    %15 = vector.load %arg1[%c0_11, %c0_12, %c0_13] : memref<2x64x256xf32, #tpu.memory_space<vmem>>, vector<2x64x256xf32>
    %16 = vector.shape_cast %14 : vector<2x64xf32> to vector<2x64x1xf32>
    %17 = vector.broadcast %16 : vector<2x64x1xf32> to vector<2x64x256xf32>
    %18 = arith.mulf %15, %17 : vector<2x64x256xf32>
    %c0_14 = arith.constant 0 : index
    %c0_15 = arith.constant 0 : index
    %c0_16 = arith.constant 0 : index
    %19 = vector.load %arg4[%c0_14, %c0_15, %c0_16] : memref<2x64x256xf32, #tpu.memory_space<vmem>>, vector<2x64x256xf32>
    tpu.vector_store %arg4[%c0_14, %c0_15, %c0_16], %18 {strides = array<i32>} : memref<2x64x256xf32, #tpu.memory_space<vmem>>, vector<2x64x256xf32>,
    return
  }
  func.func @transform_0(%arg0: i32) -> (i32, i32, i32) {
    %c0_i32 = arith.constant 0 : i32
    %c0_i32_0 = arith.constant 0 : i32
    %c0_i32_1 = arith.constant 0 : i32
    return %arg0, %c0_i32, %c0_i32_0 : i32, i32, i32
  }
  func.func @transform_1(%arg0: i32) -> (i32, i32) {
    %c0_i32 = arith.constant 0 : i32
    %c0_i32_0 = arith.constant 0 : i32
    %c0_i32_1 = arith.constant 0 : i32
    return %c0_i32, %c0_i32_0 : i32, i32
  }
  func.func @transform_2(%arg0: i32) -> (i32, i32) {
    %c0_i32 = arith.constant 0 : i32
    %c0_i32_0 = arith.constant 0 : i32
    %c0_i32_1 = arith.constant 0 : i32
    return %c0_i32, %c0_i32_0 : i32, i32
  }
  func.func @transform_3(%arg0: i32) -> (i32, i32, i32) {
    %c0_i32 = arith.constant 0 : i32
    %c0_i32_0 = arith.constant 0 : i32
    %c0_i32_1 = arith.constant 0 : i32
    return %arg0, %c0_i32, %c0_i32_0 : i32, i32, i32
  }
}

</mosaic_0001>

<llo_original>
// kernel: tpu_custom_call.1
$region0: #{tpu_custom_call.1}
  #allocation0 [shape = 'u32[]', space=smem, size = 0x4, offset = 0x4, fixed_abs, tag = 'smem constant byte address 0x4 - core index']
  #allocation1 [shape = 'u32[72,128]{1,0:T(1,128)}', space=vmem, size = 0x9000, scoped, tag = 'internal scratch']
  %s0 = inlined_call_operand.hbm [shape: f32[2,64,256], index: 0, kind: input, shape index: {}]
  %s1 = inlined_call_operand.vmem [shape: f32[64,4], index: 1, kind: input, shape index: {}]
  %s2 = inlined_call_operand.vmem [shape: f32[4,64], index: 2, kind: input, shape index: {}]
  %s3 = inlined_call_operand.hbm [shape: f32[2,64,256], index: 3, kind: output, shape index: {}]
  %s4 = sld [smem:[#allocation0]]
  $region26: #{tpu_custom_call.1} parent=0
    _
  %s6 = ssub.s32 1, %s4
  %s7 = scalar_select 0, %s6, %s4
  $region1: #{tpu_custom_call.1} parent=0
    #allocation2 [shape = 'u8[131072]{0}', space=vmem, size = 0x20000, scoped, tag = 'input window, operand 0, single buffered']
    #allocation3 [shape = 's32[1]{0}', space=sflag, size = 0x4, scoped, tag = 'scoped memory for tpu_custom_call.1']
    #allocation4 [shape = 's32[1]{0}', space=sflag, size = 0x4, scoped, tag = 'scoped memory for tpu_custom_call.1']
    #allocation5 [shape = 'u8[131072]{0}', space=vmem, size = 0x20000, scoped, tag = 'output window, operand 0, single buffered']
    %8 = vsyncpa [#allocation3], 0
    %9 = vsyncpa [#allocation4], 0
    // Predicated region
    $region2: #{tpu_custom_call.1} parent=1 // pred_check
      _
    $region3: #{tpu_custom_call.1} parent=1 // pred_check_branch
      %11 = sbr.rel (0) target = $region5
    $region4: #{tpu_custom_call.1} parent=1 // pred_region
      %13 = vsyncadd [#allocation3], 0
      %s14 = sshll.u32 %s0, 4
      %s15 = int_to_ptr.hbm [resolvable:$true] %s14
      %s16 = sshll.u32 [#allocation2], 4
      %s17 = int_to_ptr.vmem [resolvable:$true] %s16
      %22 = dma.hbm_to_vmem [thread:$0]  %s15, 4096, %s17, [#allocation3], 256, 256, 16
    $region5: #{tpu_custom_call.1} parent=1 // pred_fallthru
      _
    // Predicated region
    $region6: #{tpu_custom_call.1} parent=1 // pred_check
      _
    $region7: #{tpu_custom_call.1} parent=1 // pred_check_branch
      %24 = sbr.rel (0) target = $region9
    $region8: #{tpu_custom_call.1} parent=1 // pred_region
      _
    $region9: #{tpu_custom_call.1} parent=1 // pred_fallthru
      _
    // Predicated region
    $region10: #{tpu_custom_call.1} parent=1 // pred_check
      _
    $region11: #{tpu_custom_call.1} parent=1 // pred_check_branch
      %26 = sbr.rel (0) target = $region13
    $region12: #{tpu_custom_call.1} parent=1 // pred_region
      _
    $region13: #{tpu_custom_call.1} parent=1 // pred_fallthru
      _
    // Predicated region
    $region14: #{tpu_custom_call.1} parent=1 // pred_check
      _
    $region15: #{tpu_custom_call.1} parent=1 // pred_check_branch
      %28 = sbr.rel (0) target = $region17
    $region16: #{tpu_custom_call.1} parent=1 // pred_region
      %30 = dma.done [#allocation3], 4096
    $region17: #{tpu_custom_call.1} parent=1 // pred_fallthru
      _
    %v31 = vld [vmem:[#allocation2] sm:$0xff]
    %v32 = vld [vmem:[#allocation2 + $0x8] sm:$0xff]
    %v33 = vld [vmem:[#allocation2 + $0x10] sm:$0xff]
    %v34 = vld [vmem:[#allocation2 + $0x18] sm:$0xff]
    %v35 = vld [vmem:[#allocation2 + $0x20] sm:$0xff]
    %v36 = vld [vmem:[#allocation2 + $0x28] sm:$0xff]
    %v37 = vld [vmem:[#allocation2 + $0x30] sm:$0xff]
    %v38 = vld [vmem:[#allocation2 + $0x38] sm:$0xff]
    %v39 = vld [vmem:[#allocation2 + $0x40] sm:$0xff]
    %v40 = vld [vmem:[#allocation2 + $0x48] sm:$0xff]
    %v41 = vld [vmem:[#allocation2 + $0x50] sm:$0xff]
    %v42 = vld [vmem:[#allocation2 + $0x58] sm:$0xff]
    %v43 = vld [vmem:[#allocation2 + $0x60] sm:$0xff]
    %v44 = vld [vmem:[#allocation2 + $0x68] sm:$0xff]
    %v45 = vld [vmem:[#allocation2 + $0x70] sm:$0xff]
    %v46 = vld [vmem:[#allocation2 + $0x78] sm:$0xff]
    %v47 = vld [vmem:[#allocation2 + $0x80] sm:$0xff]
    %v48 = vld [vmem:[#allocation2 + $0x88] sm:$0xff]
    %v49 = vld [vmem:[#allocation2 + $0x90] sm:$0xff]
    %v50 = vld [vmem:[#allocation2 + $0x98] sm:$0xff]
    %v51 = vld [vmem:[#allocation2 + $0xa0] sm:$0xff]
    %v52 = vld [vmem:[#allocation2 + $0xa8] sm:$0xff]
    %v53 = vld [vmem:[#allocation2 + $0xb0] sm:$0xff]
    %v54 = vld [vmem:[#allocation2 + $0xb8] sm:$0xff]
    %v55 = vld [vmem:[#allocation2 + $0xc0] sm:$0xff]
    %v56 = vld [vmem:[#allocation2 + $0xc8] sm:$0xff]
    %v57 = vld [vmem:[#allocation2 + $0xd0] sm:$0xff]
    %v58 = vld [vmem:[#allocation2 + $0xd8] sm:$0xff]
    %v59 = vld [vmem:[#allocation2 + $0xe0] sm:$0xff]
    %v60 = vld [vmem:[#allocation2 + $0xe8] sm:$0xff]
    %v61 = vld [vmem:[#allocation2 + $0xf0] sm:$0xff]
    %v62 = vld [vmem:[#allocation2 + $0xf8] sm:$0xff]
    %v63 = vadd.f32 %v31, %v32
    %64 = vadd.xlane.f32.xlu0 %v63
    %v65 = vpop.xlane.xlu0 %64
    %v66 = vadd.f32 %v33, %v34
    %67 = vadd.xlane.f32.xlu0 %v66
    %v68 = vpop.xlane.xlu0 %67
    %v69 = vadd.f32 %v35, %v36
    %70 = vadd.xlane.f32.xlu0 %v69
    %v71 = vpop.xlane.xlu0 %70
    %v72 = vadd.f32 %v37, %v38
    %73 = vadd.xlane.f32.xlu0 %v72
    %v74 = vpop.xlane.xlu0 %73
    %v75 = vadd.f32 %v39, %v40
    %76 = vadd.xlane.f32.xlu0 %v75
    %v77 = vpop.xlane.xlu0 %76
    %v78 = vadd.f32 %v41, %v42
    %79 = vadd.xlane.f32.xlu0 %v78
    %v80 = vpop.xlane.xlu0 %79
    %v81 = vadd.f32 %v43, %v44
    %82 = vadd.xlane.f32.xlu0 %v81
    %v83 = vpop.xlane.xlu0 %82
    %v84 = vadd.f32 %v45, %v46
    %85 = vadd.xlane.f32.xlu0 %v84
    %v86 = vpop.xlane.xlu0 %85
    %v87 = vadd.f32 %v47, %v48
    %88 = vadd.xlane.f32.xlu0 %v87
    %v89 = vpop.xlane.xlu0 %88
    %v90 = vadd.f32 %v49, %v50
    %91 = vadd.xlane.f32.xlu0 %v90
    %v92 = vpop.xlane.xlu0 %91
    %v93 = vadd.f32 %v51, %v52
    %94 = vadd.xlane.f32.xlu0 %v93
    %v95 = vpop.xlane.xlu0 %94
    %v96 = vadd.f32 %v53, %v54
    %97 = vadd.xlane.f32.xlu0 %v96
    %v98 = vpop.xlane.xlu0 %97
    %v99 = vadd.f32 %v55, %v56
    %100 = vadd.xlane.f32.xlu0 %v99
    %v101 = vpop.xlane.xlu0 %100
    %v102 = vadd.f32 %v57, %v58
    %103 = vadd.xlane.f32.xlu0 %v102
    %v104 = vpop.xlane.xlu0 %103
    %v105 = vadd.f32 %v59, %v60
    %106 = vadd.xlane.f32.xlu0 %v105
    %v107 = vpop.xlane.xlu0 %106
    %v108 = vadd.f32 %v61, %v62
    %109 = vadd.xlane.f32.xlu0 %v108
    %v110 = vpop.xlane.xlu0 %109
    %v111 = vmul.f32 %v65, 0.00390625
    %v112 = vmul.f32 %v68, 0.00390625
    %v113 = vmul.f32 %v71, 0.00390625
    %v114 = vmul.f32 %v74, 0.00390625
    %v115 = vmul.f32 %v77, 0.00390625
    %v116 = vmul.f32 %v80, 0.00390625
    %v117 = vmul.f32 %v83, 0.00390625
    %v118 = vmul.f32 %v86, 0.00390625
    %v119 = vmul.f32 %v89, 0.00390625
    %v120 = vmul.f32 %v92, 0.00390625
    %v121 = vmul.f32 %v95, 0.00390625
    %v122 = vmul.f32 %v98, 0.00390625
    %v123 = vmul.f32 %v101, 0.00390625
    %v124 = vmul.f32 %v104, 0.00390625
    %v125 = vmul.f32 %v107, 0.00390625
    %v126 = vmul.f32 %v110, 0.00390625
    %v127 = vld [vmem:[%s1] sm:$0xff]
    %v128 = vld [vmem:[%s1 + $0x8] sm:$0xff]
    %v129 = vld [vmem:[%s1 + $0x10] sm:$0xff]
    %v130 = vld [vmem:[%s1 + $0x18] sm:$0xff]
    %v131 = vld [vmem:[%s1 + $0x20] sm:$0xff]
    %v132 = vld [vmem:[%s1 + $0x28] sm:$0xff]
    %v133 = vld [vmem:[%s1 + $0x30] sm:$0xff]
    %v134 = vld [vmem:[%s1 + $0x38] sm:$0xff]
    %v151 = vlaneseq
    %v152 = vand.u32 %v151, 127
    %v153 = vperm.slane %v111, %v152
    %v154 = vadd.s32 %v152, 4294967288
    %v155 = vperm.slane %v112, %v154
    %vm156 = vcmask 130112
    %v157 = vsel %vm156, %v155, %v153
    %v158 = vadd.s32 %v152, 4294967280
    %v159 = vperm.slane %v113, %v158
    %vm160 = vcmask 195712
    %v161 = vsel %vm160, %v159, %v157
    %v162 = vadd.s32 %v152, 4294967272
    %v163 = vperm.slane %v114, %v162
    %vm164 = vcmask 261312
    %v165 = vsel %vm164, %v163, %v161
    %v166 = vadd.s32 %v152, 4294967264
    %v167 = vperm.slane %v115, %v166
    %vm168 = vcmask 326912
    %v169 = vsel %vm168, %v167, %v165
    %v170 = vadd.s32 %v152, 4294967256
    %v171 = vperm.slane %v116, %v170
    %vm172 = vcmask 392512
    %v173 = vsel %vm172, %v171, %v169
    %v174 = vadd.s32 %v152, 4294967248
    %v175 = vperm.slane %v117, %v174
    %vm176 = vcmask 458112
    %v177 = vsel %vm176, %v175, %v173
    %v178 = vadd.s32 %v152, 4294967240
    %v179 = vperm.slane %v118, %v178
    %vm180 = vcmask 523712
    %v181 = vsel %vm180, %v179, %v177
    %v182 = vperm.slane %v119, %v152
    %v183 = vperm.slane %v120, %v154
    %v184 = vsel %vm156, %v183, %v182
    %v185 = vperm.slane %v121, %v158
    %v186 = vsel %vm160, %v185, %v184
    %v187 = vperm.slane %v122, %v162
    %v188 = vsel %vm164, %v187, %v186
    %v189 = vperm.slane %v123, %v166
    %v190 = vsel %vm168, %v189, %v188
    %v191 = vperm.slane %v124, %v170
    %v192 = vsel %vm172, %v191, %v190
    %v193 = vperm.slane %v125, %v174
    %v194 = vsel %vm176, %v193, %v192
    %v195 = vperm.slane %v126, %v178
    %v196 = vsel %vm180, %v195, %v194
    %vm197 = vcmask 1041409
    %v198 = vsel %vm197, %v196, %v181
    %vm199 = vcmask 523264
    %v200 = vsel %vm199, %v198, 0
    %202 = vmatpush.msra.mxu0 0.0
    %203 = vmatpush.msra.mxu0 0.0
    %204 = vmatpush.msra.mxu0 0.0
    %205 = vmatpush.msra.mxu0 0.0
    %206 = vmatpush.msra.mxu0 0.0
    %207 = vmatpush.msra.mxu0 0.0
    %208 = vmatpush.msra.mxu0 0.0
    %209 = vmatpush.msra.mxu0 0.0
    %210 = vmatpush.msra.mxu0 %v134
    %211 = vmatpush.msra.mxu0 %v133
    %212 = vmatpush.msra.mxu0 %v132
    %213 = vmatpush.msra.mxu0 %v131
    %214 = vmatpush.msra.mxu0 %v130
    %215 = vmatpush.msra.mxu0 %v129
    %216 = vmatpush.msra.mxu0 %v128
    %217 = vmatpush.msra.mxu0 %v127
    %218 = vmatmul.f32.gmra.mxu0 %v200
    %v219 = vpop.f32.mrf.mxu0
    %v220 = vadd.f32 0.0, %v219
    %221 = vdwg.mxu0
    %v222 = vmax.f32 %v220, 0.0
    %v223 = vld [vmem:[%s2] sm:$0xf]
    %vm224 = vcmask 31744
    %v226 = vsel %vm224, %v222, 0
    %vm228 = vcmask 1043456
    %v230 = vsel %vm228, %v223, 0
    %232 = vmatpush.msra.mxu0 0.0
    %233 = vmatpush.msra.mxu0 0.0
    %234 = vmatpush.msra.mxu0 0.0
    %235 = vmatpush.msra.mxu0 0.0
    %236 = vmatpush.msra.mxu0 0.0
    %237 = vmatpush.msra.mxu0 0.0
    %238 = vmatpush.msra.mxu0 0.0
    %239 = vmatpush.msra.mxu0 0.0
    %240 = vmatpush.msra.mxu0 0.0
    %241 = vmatpush.msra.mxu0 0.0
    %242 = vmatpush.msra.mxu0 0.0
    %243 = vmatpush.msra.mxu0 0.0
    %244 = vmatpush.msra.mxu0 0.0
    %245 = vmatpush.msra.mxu0 0.0
    %246 = vmatpush.msra.mxu0 0.0
    %247 = vmatpush.msra.mxu0 %v230
    %248 = vmatmul.f32.gmra.mxu0 %v226
    %v249 = vpop.f32.mrf.mxu0
    %v250 = vadd.f32 0.0, %v249
    %251 = vdwg.mxu0
    %v252 = vxor.u32 %v250, 2147483648
    %v253 = vmul.f32 %v252, 1.442695
    %v254 = vpow.pop %v253
    %v255 = vadd.f32 %v254, 1.0
    %v256 = vrcp.pop %v255
    %v257 = vmul.f32 %v255, %v256
    %v258 = vsub.f32 1.0, %v257
    %v259 = vmul.f32 %v256, %v258
    %v260 = vadd.f32 %v256, %v259
    %vm261 = vweird.f32 %v255
    %vm262 = vweird.f32 %v256
    %vm263 = vmor %vm261, %vm262
    %v264 = vsel %vm263, %v256, %v260
    %v265 = vand.u32 2147483647, %v255
    %vm266 = vcmp.eq.f32.partialorder %v265, 8.507059e+37
    %v267 = vand.u32 %v255, 2147483648
    %v268 = vor.u32 1.1754944e-38, %v267
    %v269 = vsel %vm266, %v268, %v264
    %v270 = vmul.f32 1.0, %v269
    %v271 = vperm.slane %v270, 0
    %v272 = vlaneseq
    %v273 = vshrl.u32 %v272, 7
    %275 = vset.pattern.permute.xlu0 %v273
    %276 = vperm.xlu0 %275, %v271
    %v277 = vpop.permute.xlu0 %276
    %v278 = vlaneseq
    %v279 = vshrl.u32 %v278, 7
    %v280 = vadd.s32 %v279, 8
    %281 = vset.pattern.permute.xlu0 %v280
    %282 = vperm.xlu0 %281, %v271
    %v283 = vpop.permute.xlu0 %282
    %v284 = vlaneseq
    %v285 = vshrl.u32 %v284, 7
    %v286 = vadd.s32 %v285, 16
    %287 = vset.pattern.permute.xlu0 %v286
    %288 = vperm.xlu0 %287, %v271
    %v289 = vpop.permute.xlu0 %288
    %v290 = vlaneseq
    %v291 = vshrl.u32 %v290, 7
    %v292 = vadd.s32 %v291, 24
    %293 = vset.pattern.permute.xlu0 %v292
    %294 = vperm.xlu0 %293, %v271
    %v295 = vpop.permute.xlu0 %294
    %v296 = vlaneseq
    %v297 = vshrl.u32 %v296, 7
    %v298 = vadd.s32 %v297, 32
    %299 = vset.pattern.permute.xlu0 %v298
    %300 = vperm.xlu0 %299, %v271
    %v301 = vpop.permute.xlu0 %300
    %v302 = vlaneseq
    %v303 = vshrl.u32 %v302, 7
    %v304 = vadd.s32 %v303, 40
    %305 = vset.pattern.permute.xlu0 %v304
    %306 = vperm.xlu0 %305, %v271
    %v307 = vpop.permute.xlu0 %306
    %v308 = vlaneseq
    %v309 = vshrl.u32 %v308, 7
    %v310 = vadd.s32 %v309, 48
    %311 = vset.pattern.permute.xlu0 %v310
    %312 = vperm.xlu0 %311, %v271
    %v313 = vpop.permute.xlu0 %312
    %v314 = vlaneseq
    %v315 = vshrl.u32 %v314, 7
    %v316 = vadd.s32 %v315, 56
    %317 = vset.pattern.permute.xlu0 %v316
    %318 = vperm.xlu0 %317, %v271
    %v319 = vpop.permute.xlu0 %318
    %v320 = vperm.slane %v270, 1
    %v321 = vlaneseq
    %v322 = vshrl.u32 %v321, 7
    %324 = vset.pattern.permute.xlu0 %v322
    %325 = vperm.xlu0 %324, %v320
    %v326 = vpop.permute.xlu0 %325
    %v327 = vlaneseq
    %v328 = vshrl.u32 %v327, 7
    %v329 = vadd.s32 %v328, 8
    %330 = vset.pattern.permute.xlu0 %v329
    %331 = vperm.xlu0 %330, %v320
    %v332 = vpop.permute.xlu0 %331
    %v333 = vlaneseq
    %v334 = vshrl.u32 %v333, 7
    %v335 = vadd.s32 %v334, 16
    %336 = vset.pattern.permute.xlu0 %v335
    %337 = vperm.xlu0 %336, %v320
    %v338 = vpop.permute.xlu0 %337
    %v339 = vlaneseq
    %v340 = vshrl.u32 %v339, 7
    %v341 = vadd.s32 %v340, 24
    %342 = vset.pattern.permute.xlu0 %v341
    %343 = vperm.xlu0 %342, %v320
    %v344 = vpop.permute.xlu0 %343
    %v345 = vlaneseq
    %v346 = vshrl.u32 %v345, 7
    %v347 = vadd.s32 %v346, 32
    %348 = vset.pattern.permute.xlu0 %v347
    %349 = vperm.xlu0 %348, %v320
    %v350 = vpop.permute.xlu0 %349
    %v351 = vlaneseq
    %v352 = vshrl.u32 %v351, 7
    %v353 = vadd.s32 %v352, 40
    %354 = vset.pattern.permute.xlu0 %v353
    %355 = vperm.xlu0 %354, %v320
    %v356 = vpop.permute.xlu0 %355
    %v357 = vlaneseq
    %v358 = vshrl.u32 %v357, 7
    %v359 = vadd.s32 %v358, 48
    %360 = vset.pattern.permute.xlu0 %v359
    %361 = vperm.xlu0 %360, %v320
    %v362 = vpop.permute.xlu0 %361
    %v363 = vlaneseq
    %v364 = vshrl.u32 %v363, 7
    %v365 = vadd.s32 %v364, 56
    %366 = vset.pattern.permute.xlu0 %v365
    %367 = vperm.xlu0 %366, %v320
    %v368 = vpop.permute.xlu0 %367
    %v369 = vmul.f32 %v31, %v277
    %v370 = vmul.f32 %v32, %v277
    %v371 = vmul.f32 %v33, %v283
    %v372 = vmul.f32 %v34, %v283
    %v373 = vmul.f32 %v35, %v289
    %v374 = vmul.f32 %v36, %v289
    %v375 = vmul.f32 %v37, %v295
    %v376 = vmul.f32 %v38, %v295
    %v377 = vmul.f32 %v39, %v301
    %v378 = vmul.f32 %v40, %v301
    %v379 = vmul.f32 %v41, %v307
    %v380 = vmul.f32 %v42, %v307
    %v381 = vmul.f32 %v43, %v313
    %v382 = vmul.f32 %v44, %v313
    %v383 = vmul.f32 %v45, %v319
    %v384 = vmul.f32 %v46, %v319
    %v385 = vmul.f32 %v47, %v326
    %v386 = vmul.f32 %v48, %v326
    %v387 = vmul.f32 %v49, %v332
    %v388 = vmul.f32 %v50, %v332
    %v389 = vmul.f32 %v51, %v338
    %v390 = vmul.f32 %v52, %v338
    %v391 = vmul.f32 %v53, %v344
    %v392 = vmul.f32 %v54, %v344
    %v393 = vmul.f32 %v55, %v350
    %v394 = vmul.f32 %v56, %v350
    %v395 = vmul.f32 %v57, %v356
    %v396 = vmul.f32 %v58, %v356
    %v397 = vmul.f32 %v59, %v362
    %v398 = vmul.f32 %v60, %v362
    %v399 = vmul.f32 %v61, %v368
    %v400 = vmul.f32 %v62, %v368
    %401 = vst [vmem:[#allocation5] sm:$0xff] %v369
    %402 = vst [vmem:[#allocation5 + $0x8] sm:$0xff] %v370
    %403 = vst [vmem:[#allocation5 + $0x10] sm:$0xff] %v371
    %404 = vst [vmem:[#allocation5 + $0x18] sm:$0xff] %v372
    %405 = vst [vmem:[#allocation5 + $0x20] sm:$0xff] %v373
    %406 = vst [vmem:[#allocation5 + $0x28] sm:$0xff] %v374
    %407 = vst [vmem:[#allocation5 + $0x30] sm:$0xff] %v375
    %408 = vst [vmem:[#allocation5 + $0x38] sm:$0xff] %v376
    %409 = vst [vmem:[#allocation5 + $0x40] sm:$0xff] %v377
    %410 = vst [vmem:[#allocation5 + $0x48] sm:$0xff] %v378
    %411 = vst [vmem:[#allocation5 + $0x50] sm:$0xff] %v379
    %412 = vst [vmem:[#allocation5 + $0x58] sm:$0xff] %v380
    %413 = vst [vmem:[#allocation5 + $0x60] sm:$0xff] %v381
    %414 = vst [vmem:[#allocation5 + $0x68] sm:$0xff] %v382
    %415 = vst [vmem:[#allocation5 + $0x70] sm:$0xff] %v383
    %416 = vst [vmem:[#allocation5 + $0x78] sm:$0xff] %v384
    %417 = vst [vmem:[#allocation5 + $0x80] sm:$0xff] %v385
    %418 = vst [vmem:[#allocation5 + $0x88] sm:$0xff] %v386
    %419 = vst [vmem:[#allocation5 + $0x90] sm:$0xff] %v387
    %420 = vst [vmem:[#allocation5 + $0x98] sm:$0xff] %v388
    %421 = vst [vmem:[#allocation5 + $0xa0] sm:$0xff] %v389
    %422 = vst [vmem:[#allocation5 + $0xa8] sm:$0xff] %v390
    %423 = vst [vmem:[#allocation5 + $0xb0] sm:$0xff] %v391
    %424 = vst [vmem:[#allocation5 + $0xb8] sm:$0xff] %v392
    %425 = vst [vmem:[#allocation5 + $0xc0] sm:$0xff] %v393
    %426 = vst [vmem:[#allocation5 + $0xc8] sm:$0xff] %v394
    %427 = vst [vmem:[#allocation5 + $0xd0] sm:$0xff] %v395
    %428 = vst [vmem:[#allocation5 + $0xd8] sm:$0xff] %v396
    %429 = vst [vmem:[#allocation5 + $0xe0] sm:$0xff] %v397
    %430 = vst [vmem:[#allocation5 + $0xe8] sm:$0xff] %v398
    %431 = vst [vmem:[#allocation5 + $0xf0] sm:$0xff] %v399
    %432 = vst [vmem:[#allocation5 + $0xf8] sm:$0xff] %v400
    // Predicated region
    $region18: #{tpu_custom_call.1} parent=1 // pred_check
      _
    $region19: #{tpu_custom_call.1} parent=1 // pred_check_branch
      %434 = sbr.rel (0) target = $region21
    $region20: #{tpu_custom_call.1} parent=1 // pred_region
      %436 = vsyncadd [#allocation4], 0
      %s437 = sshll.u32 [#allocation5], 4
      %s438 = int_to_ptr.vmem [resolvable:$true] %s437
      %s439 = sshll.u32 %s3, 4
      %s440 = int_to_ptr.hbm [resolvable:$true] %s439
      %445 = dma.vmem_to_hbm [thread:$0]  %s438, 4096, %s440, [#allocation4], 256, 256, 16
    $region21: #{tpu_custom_call.1} parent=1 // pred_fallthru
      _
    // Predicated region
    $region22: #{tpu_custom_call.1} parent=1 // pred_check
      _
    $region23: #{tpu_custom_call.1} parent=1 // pred_check_branch
      %447 = sbr.rel (0) target = $region25
    $region24: #{tpu_custom_call.1} parent=1 // pred_region
      %449 = dma.done [#allocation4], 4096
    $region25: #{tpu_custom_call.1} parent=1 // pred_fallthru
      _
    %450 = vsyncpa [#allocation3], 1
    %451 = vsyncpa [#allocation4], 1

</llo_original>
